<compile_context>
chip_gen: v5e
topology: v5e:2x2
jax: 0.10.0
libtpu: 0.0.40
codegen_flags: <defaults>
</compile_context>

<pallas_src>
import functools
import math

import jax
import jax.numpy as jnp
from jax import lax
from jax.experimental import pallas as pl
from jax.experimental.pallas import tpu as pltpu


def _spatial_attention_kernel(x_ref, w_ref, o_ref, *, C, K, W, BB, LO):
    """Fused SpatialAttention for BB batch elements (lane-dense flat layout).

    x_ref : (BB, C, HWP) VMEM -- input with spatial dims flattened to H*W and
            zero-padded to HWP (multiple of 128).
    w_ref : (2, K*K) VMEM -- conv weight; row 0 = mean-map taps, row 1 =
            max-map taps, tap index t = di*K + dj (OIHW flatten order).
    o_ref : (BB, 1, LO) VMEM -- sigmoid(conv) in flat layout; lane n = i*W + j
            is valid for i < HO, j < WO (the rest is ignored by the wrapper).
    """
    wv = w_ref[...]                                        # (2, K*K), one vreg
    inv_c = 1.0 / C

    for b in range(BB):                                    # static, BB is small
        xb = x_ref[b]                                      # (C, HWP)
        # Channel pooling (torch.mean / torch.max over dim=1), lane-dense.
        avg = jnp.sum(xb, axis=0, keepdims=True) * inv_c   # (1, HWP)
        mx = jnp.max(xb, axis=0, keepdims=True)            # (1, HWP)
        pooled = jnp.concatenate([avg, mx], axis=0)        # (2, HWP)

        # VALID KxK conv as K*K lane-shift taps; 4 independent partial
        # accumulators expose ILP across the VALU slots.
        parts = [None, None, None, None]
        t = 0
        for di in range(K):
            for dj in range(K):
                off = di * W + dj
                contrib = pooled[:, off:off + LO] * wv[:, t:t + 1]   # (2, LO)
                s = t % 4
                parts[s] = contrib if parts[s] is None else parts[s] + contrib
                t += 1

        conv = parts[0]
        for p in parts[1:]:
            if p is not None:
                conv = conv + p                            # (2, LO)
        conv = jnp.sum(conv, axis=0, keepdims=True)        # (1, LO) channel sum

        o_ref[b] = jax.nn.sigmoid(conv)                    # EUP exp/recip


def spatial_attention(x, conv_weight):
    """x: (B, C, H, W); conv_weight: (1, 2, K, K) (PyTorch OIHW, bias=False).

    Returns sigmoid(Conv2d(2, 1, K, bias=False)(cat[mean_c(x), max_c(x)])) of
    shape (B, 1, H-K+1, W-K+1)  (no padding, stride 1 -- as in the spec).
    """
    B, C, H, W = x.shape
    K = conv_weight.shape[-1]
    HO, WO = H - K + 1, W - K + 1
    HW = H * W
    LO = pl.cdiv(HO * W, 128) * 128                     # lane-dense output row
    HWP = pl.cdiv((K - 1) * (W + 1) + LO, 128) * 128    # padded flat input row

    # Grid: 2 "parallel" steps when the batch splits evenly (one per v7x
    # TensorCore); otherwise a single step.  Each step handles BB elements, so
    # per-step launch/DMA overhead is amortized on single-TC v5e/v6e.
    G = 2 if (B >= 2 and B % 2 == 0) else 1
    BB = B // G

    x_flat = x.astype(jnp.float32).reshape(B, C, HW)
    x_flat = jnp.pad(x_flat, ((0, 0), (0, 0), (0, HWP - HW)))
    w2 = conv_weight.astype(jnp.float32).reshape(2, K * K)

    out_flat = pl.pallas_call(
        functools.partial(_spatial_attention_kernel,
                          C=C, K=K, W=W, BB=BB, LO=LO),
        out_shape=jax.ShapeDtypeStruct((B, 1, LO), jnp.float32),
        grid=(G,),
        in_specs=[
            pl.BlockSpec((BB, C, HWP), lambda g: (g, 0, 0)),
            pl.BlockSpec((2, K * K), lambda g: (0, 0)),
        ],
        out_specs=pl.BlockSpec((BB, 1, LO), lambda g: (g, 0, 0)),
        compiler_params=pltpu.CompilerParams(
            dimension_semantics=("parallel",)),
    )(x_flat, w2)

    # Reconstruct the (B, 1, HO, WO) spec layout (pure XLA plumbing).
    y = out_flat[:, 0, :HO * W].reshape(B, HO, W)[:, :, :WO]
    return y.reshape(B, 1, HO, WO)


def spatial_attention_ref(x, conv_weight):
    """Pure-JAX reference with identical semantics (for verification)."""
    avg = jnp.mean(x, axis=1, keepdims=True)
    mx = jnp.max(x, axis=1, keepdims=True)
    cat = jnp.concatenate([avg, mx], axis=1)
    y = lax.conv_general_dilated(
        cat, conv_weight, window_strides=(1, 1), padding="VALID",
        dimension_numbers=("NCHW", "OIHW", "NCHW"))
    return jax.nn.sigmoid(y)


if __name__ == "__main__":
    B, C, H, W = 2, 4, 16, 16
    key = jax.random.PRNGKey(0)

    for K in (3, 7):                                  # two typical kernel sizes
        kx, kw, key = jax.random.split(key, 3)
        x = jax.random.normal(kx, (B, C, H, W), jnp.float32)
        bound = 1.0 / math.sqrt(2 * K * K)            # PyTorch Conv2d init range
        w = jax.random.uniform(kw, (1, 2, K, K), jnp.float32, -bound, bound)

        out = jax.block_until_ready(spatial_attention(x, w))
        ref = spatial_attention_ref(x, w)

        assert out.shape == (B, 1, H - K + 1, W - K + 1)
        assert bool(jnp.all(jnp.isfinite(out)))
        assert bool(jnp.all((out >= 0.0) & (out <= 1.0)))
        assert bool(jnp.allclose(out, ref, atol=1e-5, rtol=1e-5))

    print("KERNEL_OK")
</pallas_src>

<mosaic_0001>
module attributes {stable_mosaic.version = 11 : i64} {
  func.func @_spatial_attention_kernel(%arg0: i32, %arg1: memref<1x4x384xf32, #tpu.memory_space<vmem>>, %arg2: memref<2x9xf32, #tpu.memory_space<vmem>>, %arg3: memref<1x1x256xf32, #tpu.memory_space<vmem>>) attributes {dimension_semantics = [#tpu.dimension_semantics<parallel>], iteration_bounds = array<i64: 2>, scalar_prefetch = 0 : i64, scratch_operands = 0 : i64, tpu.core_type = #tpu.core_type<tc>, window_params = [{transform_indices = @transform_0, window_bounds = array<i64: 1, 4, 384>}, {pipeline_mode = #tpu.pipeline_mode<synchronous>, transform_indices = @transform_1, window_bounds = array<i64: 2, 9>}, {transform_indices = @transform_2, window_bounds = array<i64: 1, 1, 256>}]} {
    %c0 = arith.constant 0 : index
    %c0_0 = arith.constant 0 : index
    %0 = vector.load %arg2[%c0, %c0_0] : memref<2x9xf32, #tpu.memory_space<vmem>>, vector<2x9xf32>
    %c0_1 = arith.constant 0 : index
    %c0_2 = arith.constant 0 : index
    %c0_3 = arith.constant 0 : index
    %1 = vector.load %arg1[%c0_1, %c0_2, %c0_3] : memref<1x4x384xf32, #tpu.memory_space<vmem>>, vector<1x4x384xf32>
    %2 = vector.shape_cast %1 : vector<1x4x384xf32> to vector<4x384xf32>
    %cst = arith.constant dense<0.000000e+00> : vector<384xf32>
    %3 = vector.multi_reduction <add>, %2, %cst [0] : vector<4x384xf32> to vector<384xf32>
    %4 = vector.shape_cast %3 : vector<384xf32> to vector<1x384xf32>
    %cst_4 = arith.constant 2.500000e-01 : f32
    %5 = vector.broadcast %cst_4 : f32 to vector<1x384xf32>
    %6 = arith.mulf %4, %5 : vector<1x384xf32>
    %cst_5 = arith.constant dense<0xFF800000> : vector<384xf32>
    %7 = vector.multi_reduction <maximumf>, %2, %cst_5 [0] : vector<4x384xf32> to vector<384xf32>
    %8 = vector.shape_cast %7 : vector<384xf32> to vector<1x384xf32>
    %9 = tpu.concatenate %6, %8 in 0 : vector<1x384xf32>, vector<1x384xf32> -> vector<2x384xf32>
    %10 = vector.extract_strided_slice %9 {offsets = [0, 0], sizes = [2, 256], strides = [1, 1]} : vector<2x384xf32> to vector<2x256xf32>
    %11 = vector.extract_strided_slice %0 {offsets = [0, 0], sizes = [2, 1], strides = [1, 1]} : vector<2x9xf32> to vector<2x1xf32>
    %12 = vector.broadcast %11 : vector<2x1xf32> to vector<2x256xf32>
    %13 = arith.mulf %10, %12 : vector<2x256xf32>
    %14 = vector.extract_strided_slice %9 {offsets = [0, 1], sizes = [2, 256], strides = [1, 1]} : vector<2x384xf32> to vector<2x256xf32>
    %15 = vector.extract_strided_slice %0 {offsets = [0, 1], sizes = [2, 1], strides = [1, 1]} : vector<2x9xf32> to vector<2x1xf32>
    %16 = vector.broadcast %15 : vector<2x1xf32> to vector<2x256xf32>
    %17 = arith.mulf %14, %16 : vector<2x256xf32>
    %18 = vector.extract_strided_slice %9 {offsets = [0, 2], sizes = [2, 256], strides = [1, 1]} : vector<2x384xf32> to vector<2x256xf32>
    %19 = vector.extract_strided_slice %0 {offsets = [0, 2], sizes = [2, 1], strides = [1, 1]} : vector<2x9xf32> to vector<2x1xf32>
    %20 = vector.broadcast %19 : vector<2x1xf32> to vector<2x256xf32>
    %21 = arith.mulf %18, %20 : vector<2x256xf32>
    %22 = vector.extract_strided_slice %9 {offsets = [0, 16], sizes = [2, 256], strides = [1, 1]} : vector<2x384xf32> to vector<2x256xf32>
    %23 = vector.extract_strided_slice %0 {offsets = [0, 3], sizes = [2, 1], strides = [1, 1]} : vector<2x9xf32> to vector<2x1xf32>
    %24 = vector.broadcast %23 : vector<2x1xf32> to vector<2x256xf32>
    %25 = arith.mulf %22, %24 : vector<2x256xf32>
    %26 = vector.extract_strided_slice %9 {offsets = [0, 17], sizes = [2, 256], strides = [1, 1]} : vector<2x384xf32> to vector<2x256xf32>
    %27 = vector.extract_strided_slice %0 {offsets = [0, 4], sizes = [2, 1], strides = [1, 1]} : vector<2x9xf32> to vector<2x1xf32>
    %28 = vector.broadcast %27 : vector<2x1xf32> to vector<2x256xf32>
    %29 = arith.mulf %26, %28 : vector<2x256xf32>
    %30 = arith.addf %13, %29 : vector<2x256xf32>
    %31 = vector.extract_strided_slice %9 {offsets = [0, 18], sizes = [2, 256], strides = [1, 1]} : vector<2x384xf32> to vector<2x256xf32>
    %32 = vector.extract_strided_slice %0 {offsets = [0, 5], sizes = [2, 1], strides = [1, 1]} : vector<2x9xf32> to vector<2x1xf32>
    %33 = vector.broadcast %32 : vector<2x1xf32> to vector<2x256xf32>
    %34 = arith.mulf %31, %33 : vector<2x256xf32>
    %35 = arith.addf %17, %34 : vector<2x256xf32>
    %36 = vector.extract_strided_slice %9 {offsets = [0, 32], sizes = [2, 256], strides = [1, 1]} : vector<2x384xf32> to vector<2x256xf32>
    %37 = vector.extract_strided_slice %0 {offsets = [0, 6], sizes = [2, 1], strides = [1, 1]} : vector<2x9xf32> to vector<2x1xf32>
    %38 = vector.broadcast %37 : vector<2x1xf32> to vector<2x256xf32>
    %39 = arith.mulf %36, %38 : vector<2x256xf32>
    %40 = arith.addf %21, %39 : vector<2x256xf32>
    %41 = vector.extract_strided_slice %9 {offsets = [0, 33], sizes = [2, 256], strides = [1, 1]} : vector<2x384xf32> to vector<2x256xf32>
    %42 = vector.extract_strided_slice %0 {offsets = [0, 7], sizes = [2, 1], strides = [1, 1]} : vector<2x9xf32> to vector<2x1xf32>
    %43 = vector.broadcast %42 : vector<2x1xf32> to vector<2x256xf32>
    %44 = arith.mulf %41, %43 : vector<2x256xf32>
    %45 = arith.addf %25, %44 : vector<2x256xf32>
    %46 = vector.extract_strided_slice %9 {offsets = [0, 34], sizes = [2, 256], strides = [1, 1]} : vector<2x384xf32> to vector<2x256xf32>
    %47 = vector.extract_strided_slice %0 {offsets = [0, 8], sizes = [2, 1], strides = [1, 1]} : vector<2x9xf32> to vector<2x1xf32>
    %48 = vector.broadcast %47 : vector<2x1xf32> to vector<2x256xf32>
    %49 = arith.mulf %46, %48 : vector<2x256xf32>
    %50 = arith.addf %30, %49 : vector<2x256xf32>
    %51 = arith.addf %50, %35 : vector<2x256xf32>
    %52 = arith.addf %51, %40 : vector<2x256xf32>
    %53 = arith.addf %52, %45 : vector<2x256xf32>
    %cst_6 = arith.constant dense<0.000000e+00> : vector<256xf32>
    %54 = vector.multi_reduction <add>, %53, %cst_6 [0] : vector<2x256xf32> to vector<256xf32>
    %55 = vector.shape_cast %54 : vector<256xf32> to vector<1x256xf32>
    %56 = arith.negf %55 : vector<1x256xf32>
    %57 = math.exp %56 : vector<1x256xf32>
    %cst_7 = arith.constant 1.000000e+00 : f32
    %58 = vector.broadcast %cst_7 : f32 to vector<1x256xf32>
    %59 = arith.addf %58, %57 : vector<1x256xf32>
    %60 = arith.divf %58, %59 : vector<1x256xf32>
    %c0_8 = arith.constant 0 : index
    %c0_9 = arith.constant 0 : index
    %c0_10 = arith.constant 0 : index
    %61 = vector.load %arg3[%c0_8, %c0_9, %c0_10] : memref<1x1x256xf32, #tpu.memory_space<vmem>>, vector<1x1x256xf32>
    %62 = vector.shape_cast %61 : vector<1x1x256xf32> to vector<1x256xf32>
    %63 = vector.shape_cast %60 : vector<1x256xf32> to vector<1x1x256xf32>
    tpu.vector_store %arg3[%c0_8, %c0_9, %c0_10], %63 {strides = array<i32>} : memref<1x1x256xf32, #tpu.memory_space<vmem>>, vector<1x1x256xf32>,
    return
  }
  func.func @transform_0(%arg0: i32) -> (i32, i32, i32) {
    %c0_i32 = arith.constant 0 : i32
    %c0_i32_0 = arith.constant 0 : i32
    %c0_i32_1 = arith.constant 0 : i32
    return %arg0, %c0_i32, %c0_i32_0 : i32, i32, i32
  }
  func.func @transform_1(%arg0: i32) -> (i32, i32) {
    %c0_i32 = arith.constant 0 : i32
    %c0_i32_0 = arith.constant 0 : i32
    %c0_i32_1 = arith.constant 0 : i32
    return %c0_i32, %c0_i32_0 : i32, i32
  }
  func.func @transform_2(%arg0: i32) -> (i32, i32, i32) {
    %c0_i32 = arith.constant 0 : i32
    %c0_i32_0 = arith.constant 0 : i32
    %c0_i32_1 = arith.constant 0 : i32
    return %arg0, %c0_i32, %c0_i32_0 : i32, i32, i32
  }
}

</mosaic_0001>

<llo_original>
// kernel: tpu_custom_call.1
$region0: #{tpu_custom_call.1}
  #allocation0 [shape = 'u32[]', space=smem, size = 0x4, offset = 0x4, fixed_abs, tag = 'smem constant byte address 0x4 - core index']
  #allocation1 [shape = 'u32[72,128]{1,0:T(1,128)}', space=vmem, size = 0x9000, scoped, tag = 'internal scratch']
  %s0 = inlined_call_operand.hbm [shape: f32[2,4,384], index: 0, kind: input, shape index: {}]
  %s1 = inlined_call_operand.hbm [shape: f32[2,9], index: 1, kind: input, shape index: {}]
  %s2 = inlined_call_operand.hbm [shape: f32[2,1,256], index: 2, kind: output, shape index: {}]
  %s3 = sld [smem:[#allocation0]]
  $region49: #{tpu_custom_call.1} parent=0
    _
  %s5 = ssub.s32 1, %s3
  %s6 = scalar_select 0, %s5, %s3
  $region1: #{tpu_custom_call.1} parent=0
    #allocation2 [shape = 'u8[12288]{0}', space=vmem, size = 0x3000, scoped, tag = 'input window, operand 0']
    #allocation3 [shape = 's32[2]{0}', space=sflag, size = 0x8, scoped, tag = 'scoped memory for tpu_custom_call.1']
    #allocation4 [shape = 's32[2]{0}', space=sflag, size = 0x8, scoped, tag = 'scoped memory for tpu_custom_call.1']
    #allocation5 [shape = 'u8[1024]{0}', space=vmem, size = 0x400, scoped, tag = 'input window, operand 1, single buffered']
    #allocation6 [shape = 's32[1]{0}', space=sflag, size = 0x4, scoped, tag = 'scoped memory for tpu_custom_call.1']
    #allocation7 [shape = 'u8[2048]{0}', space=vmem, size = 0x800, scoped, tag = 'output window, operand 0']
    %7 = vsyncpa [#allocation3], 0
    %s8 = scalar_lea.sflag [#allocation3], 1
    %9 = vsyncpa %s8, 0
    %10 = vsyncpa [#allocation6], 0
    %11 = vsyncpa [#allocation4], 0
    %s12 = scalar_lea.sflag [#allocation4], 1
    %13 = vsyncpa %s12, 0
    loop: start=0, step=1, limit=4
    $region2: #{tpu_custom_call.1} parent=1 // loop_pre_header
      _
    $region3: #{tpu_custom_call.1} parent=1 // loop_header
      %s15 = sphi 0, %s19
      %p16 = scmp.ge.s32.totalorder %s15, 4
      %s25 = sphi 0, %s27
      %s28 = sphi 0, %s25
      %s29 = sphi 0, %s28
      %s45 = sphi 0, %s29
      %s49 = sphi 0, %s49
      %s51 = sphi 0, %s49
      %s52 = sphi 0, %s51
      %s66 = sphi 0, %s52
      %s72 = sphi 0, %s74
      %s75 = sphi 0, %s72
      %s76 = sphi 0, %s75
      %s92 = sphi 0, %s76
    $region4: #{tpu_custom_call.1} parent=1 // loop_header_branch
      %18 = sbr.rel (%p16) target = $region8
    $region5: #{tpu_custom_call.1} parent=1 // loop_body
      %s20 = ssub.s32 %s15, 1
      %s21 = ssub.s32 %s15, 2
      %s22 = sadd.s32 %s15, 1
      %s23 = ssub.s32 %s15, %s22
      %p24 = scmp.eq.s32.totalorder %s23, 0
      %s26 = sadd.s32 %s25, 1
      %s27 = scalar_select %p24, %s25, %s26
      %p30 = pneg %p24
      %p31 = scmp.eq.s32.totalorder %s15, 1
      %p32 = por %p30, %p31
      %p33 = scmp.ne.s32.totalorder %s25, %s28
      %p34 = scmp.eq.s32.totalorder %s15, 0
      %p35 = por %p33, %p34
      %p36 = scmp.ne.s32.totalorder %s25, %s28
      %p37 = scmp.eq.s32.totalorder %s20, 1
      %p38 = por %p36, %p37
      %p39 = scmp.ne.s32.totalorder %s28, %s29
      %p40 = scmp.eq.s32.totalorder %s20, 0
      %p41 = por %p39, %p40
      %p42 = scmp.ne.s32.totalorder %s28, %s29
      %p43 = scmp.eq.s32.totalorder %s21, 1
      %p44 = por %p42, %p43
      %p46 = scmp.ne.s32.totalorder %s29, %s45
      %p47 = scmp.eq.s32.totalorder %s21, 0
      %p48 = por %p46, %p47
      %s50 = sadd.s32 %s49, 1
      %p53 = scmp.eq.s32.totalorder %s15, 1
      %p54 = scmp.ne.s32.totalorder %s49, %s51
      %p55 = scmp.eq.s32.totalorder %s15, 0
      %p56 = por %p54, %p55
      %p57 = scmp.ne.s32.totalorder %s49, %s51
      %p58 = scmp.eq.s32.totalorder %s20, 1
      %p59 = por %p57, %p58
      %p60 = scmp.ne.s32.totalorder %s51, %s52
      %p61 = scmp.eq.s32.totalorder %s20, 0
      %p62 = por %p60, %p61
      %p63 = scmp.ne.s32.totalorder %s51, %s52
      %p64 = scmp.eq.s32.totalorder %s21, 1
      %p65 = por %p63, %p64
      %p67 = scmp.ne.s32.totalorder %s52, %s66
      %p68 = scmp.eq.s32.totalorder %s21, 0
      %p69 = por %p67, %p68
      %s70 = ssub.s32 %s15, %s22
      %p71 = scmp.eq.s32.totalorder %s70, 0
      %s73 = sadd.s32 %s72, 1
      %s74 = scalar_select %p71, %s72, %s73
      %p77 = pneg %p71
      %p78 = scmp.eq.s32.totalorder %s15, 1
      %p79 = por %p77, %p78
      %p80 = scmp.ne.s32.totalorder %s72, %s75
      %p81 = scmp.eq.s32.totalorder %s15, 0
      %p82 = por %p80, %p81
      %p83 = scmp.ne.s32.totalorder %s72, %s75
      %p84 = scmp.eq.s32.totalorder %s20, 1
      %p85 = por %p83, %p84
      %p86 = scmp.ne.s32.totalorder %s75, %s76
      %p87 = scmp.eq.s32.totalorder %s20, 0
      %p88 = por %p86, %p87
      %p89 = scmp.ne.s32.totalorder %s75, %s76
      %p90 = scmp.eq.s32.totalorder %s21, 1
      %p91 = por %p89, %p90
      %p93 = scmp.ne.s32.totalorder %s76, %s92
      %p94 = scmp.eq.s32.totalorder %s21, 0
      %p95 = por %p93, %p94
      %p96 = scmp.le.s32.totalorder 1, %s15
      %p97 = scmp.lt.s32.totalorder %s15, 3
      %p98 = pnand %p96, %p97
      %p99 = pneg %p98
      // Predicated region
      $region9: #{tpu_custom_call.1} parent=5 // pred_check
        _
      $region10: #{tpu_custom_call.1} parent=5 // pred_check_branch
        %101 = sbr.rel (%p98) target = $region12
      $region11: #{tpu_custom_call.1} parent=5 // pred_region
        %s102 = ssub.s32 %s15, 1
        // Predicated region
        $region13: #{tpu_custom_call.1} parent=11 // pred_check
          %p103 = pneg %p62
        $region14: #{tpu_custom_call.1} parent=11 // pred_check_branch
          %105 = sbr.rel (%p103) target = $region16
        $region15: #{tpu_custom_call.1} parent=11 // pred_region
          %107 = vsyncadd [#allocation6], 0
          %s109 = sshll.u32 %s1, 4
          %s110 = int_to_ptr.hbm [resolvable:$true] %s109
          %s111 = sshll.u32 [#allocation5], 4
          %s112 = int_to_ptr.vmem [resolvable:$true] %s111
          %114 = dma.hbm_to_vmem [thread:$0]  %s110, 32, %s112, [#allocation6]
        $region16: #{tpu_custom_call.1} parent=11 // pred_fallthru
          _
      $region12: #{tpu_custom_call.1} parent=5 // pred_fallthru
        _
      %p115 = scmp.lt.s32.totalorder %s15, 2
      // Predicated region
      $region17: #{tpu_custom_call.1} parent=5 // pred_check
        %p116 = pneg %p115
      $region18: #{tpu_custom_call.1} parent=5 // pred_check_branch
        %118 = sbr.rel (%p116) target = $region20
      $region19: #{tpu_custom_call.1} parent=5 // pred_region
        // Predicated region
        $region21: #{tpu_custom_call.1} parent=19 // pred_check
          %p119 = pneg %p35
        $region22: #{tpu_custom_call.1} parent=19 // pred_check_branch
          %121 = sbr.rel (%p119) target = $region24
        $region23: #{tpu_custom_call.1} parent=19 // pred_region
          %s122 = sand.u32 %s25, 1
          %s123 = scalar_lea.sflag [#allocation3], %s122
          %s124 = sand.u32 %s25, 1
          %s125 = smul.addr %s124, 12
          %s126 = scalar_lea.vmem [#allocation2], %s125
          %128 = vsyncadd %s123, 0
          %s129 = smul.addr %s15, 3
          %s130 = smul.addr %s129, 4
          %s131 = scalar_lea.hbm %s0, %s130
          %s133 = sshll.u32 %s131, 4
          %s134 = int_to_ptr.hbm [resolvable:$true] %s133
          %s135 = sshll.u32 %s126, 4
          %s136 = int_to_ptr.vmem [resolvable:$true] %s135
          %138 = dma.hbm_to_vmem [thread:$0]  %s134, 192, %s136, %s123
        $region24: #{tpu_custom_call.1} parent=19 // pred_fallthru
          _
      $region20: #{tpu_custom_call.1} parent=5 // pred_fallthru
        _
      %p139 = scmp.le.s32.totalorder 1, %s15
      %p140 = scmp.lt.s32.totalorder %s15, 3
      %p141 = pnand %p139, %p140
      %p142 = pneg %p141
      // Predicated region
      $region25: #{tpu_custom_call.1} parent=5 // pred_check
        _
      $region26: #{tpu_custom_call.1} parent=5 // pred_check_branch
        %144 = sbr.rel (%p141) target = $region28
      $region27: #{tpu_custom_call.1} parent=5 // pred_region
        %s145 = ssub.s32 %s15, 1
        %s146 = sand.u32 %s28, 1
        %s147 = scalar_lea.sflag [#allocation3], %s146
        %s148 = sand.u32 %s28, 1
        %s149 = smul.addr %s148, 12
        %s150 = scalar_lea.vmem [#allocation2], %s149
        // Predicated region
        $region29: #{tpu_custom_call.1} parent=27 // pred_check
          %p151 = pneg %p41
        $region30: #{tpu_custom_call.1} parent=27 // pred_check_branch
          %153 = sbr.rel (%p151) target = $region32
        $region31: #{tpu_custom_call.1} parent=27 // pred_region
          %155 = dma.done %s147, 192
        $region32: #{tpu_custom_call.1} parent=27 // pred_fallthru
          _
        // Predicated region
        $region33: #{tpu_custom_call.1} parent=27 // pred_check
          %p156 = pneg %p62
        $region34: #{tpu_custom_call.1} parent=27 // pred_check_branch
          %158 = sbr.rel (%p156) target = $region36
        $region35: #{tpu_custom_call.1} parent=27 // pred_region
          %160 = dma.done [#allocation6], 32
        $region36: #{tpu_custom_call.1} parent=27 // pred_fallthru
          _
        %s161 = sand.u32 %s28, 1
        %s162 = scalar_lea.sflag [#allocation3], %s161
        %s163 = sand.u32 %s28, 1
        %s164 = smul.addr %s163, 12
        %s165 = scalar_lea.vmem [#allocation2], %s164
        %p166 = pneg %p41
        %p167 = pneg %p38
        %p168 = pneg %p62
        %p169 = pneg %p59
        %p170 = pneg %p88
        %p171 = pneg %p85
        %s172 = sand.u32 %s75, 1
        %s173 = scalar_lea.sflag [#allocation4], %s172
        %s174 = sand.u32 %s75, 1
        %s175 = smul.addr %s174, 2
        %s176 = scalar_lea.vmem [#allocation7], %s175
        %v177 = vld [vmem:[#allocation5] sm:$0x3]
        %v178 = vld [vmem:[%s150] sm:$0xff]
        %v179 = vld [vmem:[%s150 + $0x8] sm:$0xf]
        %182 = vst [vmem:[#allocation1] ss:$2 sm:$0xff] %v178
        %s183 = scalar_lea.vmem [#allocation1], 16
        %184 = vst [vmem:[%s183] ss:$2 sm:$0xff] %v179
        %v185 = vld.sshfl [vmem:[#allocation1] sm:$0xff pattern:$0x75316420]
        %v186 = vld.sshfl [vmem:[#allocation1 + $0x8] sm:$0xff pattern:$0x75316420]
        %v187 = vld.sshfl [vmem:[#allocation1 + $0x10] sm:$0xff pattern:$0x75316420]
        %vm191 = vcmask 1043456
        %v192 = vsel %vm191, %v185, 0.0
        %v193 = vrot.slane %v192, 4
        %v194 = vadd.f32 %v192, %v193
        %v195 = vrot.slane %v194, 2
        %v196 = vadd.f32 %v194, %v195
        %v197 = vrot.slane %v196, 1
        %v198 = vadd.f32 %v196, %v197
        %v199 = vsel %vm191, %v186, 0.0
        %v200 = vrot.slane %v199, 4
        %v201 = vadd.f32 %v199, %v200
        %v202 = vrot.slane %v201, 2
        %v203 = vadd.f32 %v201, %v202
        %v204 = vrot.slane %v203, 1
        %v205 = vadd.f32 %v203, %v204
        %v206 = vsel %vm191, %v187, 0.0
        %v207 = vrot.slane %v206, 4
        %v208 = vadd.f32 %v206, %v207
        %v209 = vrot.slane %v208, 2
        %v210 = vadd.f32 %v208, %v209
        %v211 = vrot.slane %v210, 1
        %v212 = vadd.f32 %v210, %v211
        %v213 = vmul.f32 %v198, 0.25
        %v214 = vmul.f32 %v205, 0.25
        %v215 = vmul.f32 %v212, 0.25
        %216 = vst [vmem:[#allocation1] ss:$2 sm:$0xff] %v178
        %s217 = scalar_lea.vmem [#allocation1], 16
        %218 = vst [vmem:[%s217] ss:$2 sm:$0xff] %v179
        %v219 = vld.sshfl [vmem:[#allocation1] sm:$0xff pattern:$0x75316420]
        %v220 = vld.sshfl [vmem:[#allocation1 + $0x8] sm:$0xff pattern:$0x75316420]
        %v221 = vld.sshfl [vmem:[#allocation1 + $0x10] sm:$0xff pattern:$0x75316420]
        %v225 = vsel %vm191, %v219, -inf
        %v226 = vrot.slane %v225, 4
        %v227 = vmax.f32 %v225, %v226
        %v228 = vrot.slane %v227, 2
        %v229 = vmax.f32 %v227, %v228
        %v230 = vrot.slane %v229, 1
        %v231 = vmax.f32 %v229, %v230
        %v232 = vsel %vm191, %v220, -inf
        %v233 = vrot.slane %v232, 4
        %v234 = vmax.f32 %v232, %v233
        %v235 = vrot.slane %v234, 2
        %v236 = vmax.f32 %v234, %v235
        %v237 = vrot.slane %v236, 1
        %v238 = vmax.f32 %v236, %v237
        %v239 = vsel %vm191, %v221, -inf
        %v240 = vrot.slane %v239, 4
        %v241 = vmax.f32 %v239, %v240
        %v242 = vrot.slane %v241, 2
        %v243 = vmax.f32 %v241, %v242
        %v244 = vrot.slane %v243, 1
        %v245 = vmax.f32 %v243, %v244
        %vm246 = vcmask 1040384
        %v247 = vsel %vm246, %v213, %v231
        %v248 = vsel %vm246, %v214, %v238
        %v249 = vsel %vm246, %v215, %v245
        %251 = vset.pattern.permute.xlu0 0
        %252 = vperm.xlu0 %251, %v177
        %v253 = vpop.permute.xlu0 %252
        %v255 = vmul.f32 %v247, %v253
        %v256 = vmul.f32 %v248, %v253
        %257 = vset.pattern.permute.xlu0 1
        %258 = vperm.xlu0 %257, %v177
        %v259 = vpop.permute.xlu0 %258
        %v261 = vmul.f32 %v247, %v259
        %v262 = vmul.f32 %v248, %v259
        %v263 = vmul.f32 %v249, %v259
        %264 = vset.pattern.permute.xlu0 2
        %265 = vperm.xlu0 %264, %v177
        %v266 = vpop.permute.xlu0 %265
        %v268 = vmul.f32 %v247, %v266
        %v269 = vmul.f32 %v248, %v266
        %v270 = vmul.f32 %v249, %v266
        %271 = vset.pattern.permute.xlu0 3
        %272 = vperm.xlu0 %271, %v177
        %v273 = vpop.permute.xlu0 %272
        %v275 = vmul.f32 %v247, %v273
        %v276 = vmul.f32 %v248, %v273
        %v277 = vmul.f32 %v249, %v273
        %278 = vset.pattern.permute.xlu0 4
        %279 = vperm.xlu0 %278, %v177
        %v280 = vpop.permute.xlu0 %279
        %v282 = vmul.f32 %v247, %v280
        %v283 = vmul.f32 %v248, %v280
        %v284 = vmul.f32 %v249, %v280
        %288 = vrot.lane.b32.xlu0 %v282, 111
        %v289 = vpop.permute.xlu0 %288
        %290 = vrot.lane.b32.xlu0 %v283, 111
        %v291 = vpop.permute.xlu0 %290
        %292 = vrot.lane.b32.xlu0 %v284, 111
        %v293 = vpop.permute.xlu0 %292
        %vm294 = vcmask 908288
        %v295 = vsel %vm294, %v289, %v291
        %v296 = vsel %vm294, %v291, %v293
        %v299 = vadd.f32 %v255, %v295
        %v300 = vadd.f32 %v256, %v296
        %301 = vset.pattern.permute.xlu0 5
        %302 = vperm.xlu0 %301, %v177
        %v303 = vpop.permute.xlu0 %302
        %v305 = vmul.f32 %v247, %v303
        %v306 = vmul.f32 %v248, %v303
        %v307 = vmul.f32 %v249, %v303
        %311 = vrot.lane.b32.xlu0 %v305, 111
        %v312 = vpop.permute.xlu0 %311
        %313 = vrot.lane.b32.xlu0 %v306, 111
        %v314 = vpop.permute.xlu0 %313
        %315 = vrot.lane.b32.xlu0 %v307, 111
        %v316 = vpop.permute.xlu0 %315
        %v317 = vsel %vm294, %v312, %v314
        %v318 = vsel %vm294, %v314, %v316
        %v322 = vadd.f32 %v261, %v317
        %v323 = vadd.f32 %v262, %v318
        %v324 = vadd.f32 %v263, %v316
        %325 = vset.pattern.permute.xlu0 6
        %326 = vperm.xlu0 %325, %v177
        %v327 = vpop.permute.xlu0 %326
        %v329 = vmul.f32 %v247, %v327
        %v330 = vmul.f32 %v248, %v327
        %v331 = vmul.f32 %v249, %v327
        %335 = vrot.lane.b32.xlu0 %v329, 98
        %v336 = vpop.permute.xlu0 %335
        %337 = vrot.lane.b32.xlu0 %v330, 98
        %v338 = vpop.permute.xlu0 %337
        %339 = vrot.lane.b32.xlu0 %v331, 98
        %v340 = vpop.permute.xlu0 %339
        %vm341 = vcmask 801792
        %v342 = vsel %vm341, %v336, %v338
        %v343 = vsel %vm341, %v338, %v340
        %v347 = vadd.f32 %v268, %v342
        %v348 = vadd.f32 %v269, %v343
        %v349 = vadd.f32 %v270, %v340
        %350 = vset.pattern.permute.xlu0 7
        %351 = vperm.xlu0 %350, %v177
        %v352 = vpop.permute.xlu0 %351
        %v354 = vmul.f32 %v247, %v352
        %v355 = vmul.f32 %v248, %v352
        %v356 = vmul.f32 %v249, %v352
        %360 = vrot.lane.b32.xlu0 %v354, 111
        %v361 = vpop.permute.xlu0 %360
        %362 = vrot.lane.b32.xlu0 %v355, 111
        %v363 = vpop.permute.xlu0 %362
        %364 = vrot.lane.b32.xlu0 %v356, 111
        %v365 = vpop.permute.xlu0 %364
        %v366 = vsel %vm294, %v361, %v363
        %v367 = vsel %vm294, %v363, %v365
        %v371 = vadd.f32 %v275, %v366
        %v372 = vadd.f32 %v276, %v367
        %v373 = vadd.f32 %v277, %v365
        %374 = vset.pattern.permute.xlu0 8
        %375 = vperm.xlu0 %374, %v177
        %v376 = vpop.permute.xlu0 %375
        %v378 = vmul.f32 %v247, %v376
        %v379 = vmul.f32 %v248, %v376
        %v380 = vmul.f32 %v249, %v376
        %384 = vrot.lane.b32.xlu0 %v378, 94
        %v385 = vpop.permute.xlu0 %384
        %386 = vrot.lane.b32.xlu0 %v379, 94
        %v387 = vpop.permute.xlu0 %386
        %388 = vrot.lane.b32.xlu0 %v380, 94
        %v389 = vpop.permute.xlu0 %388
        %vm390 = vcmask 769024
        %v391 = vsel %vm390, %v385, %v387
        %v392 = vsel %vm390, %v387, %v389
        %v395 = vadd.f32 %v299, %v391
        %v396 = vadd.f32 %v300, %v392
        %400 = vrot.lane.b32.xlu0 %v322, 127
        %v401 = vpop.permute.xlu0 %400
        %402 = vrot.lane.b32.xlu0 %v323, 127
        %v403 = vpop.permute.xlu0 %402
        %404 = vrot.lane.b32.xlu0 %v324, 127
        %v405 = vpop.permute.xlu0 %404
        %vm406 = vcmask 1039360
        %v407 = vsel %vm406, %v401, %v403
        %v408 = vsel %vm406, %v403, %v405
        %v411 = vadd.f32 %v395, %v407
        %v412 = vadd.f32 %v396, %v408
        %416 = vrot.lane.b32.xlu0 %v347, 126
        %v417 = vpop.permute.xlu0 %416
        %418 = vrot.lane.b32.xlu0 %v348, 126
        %v419 = vpop.permute.xlu0 %418
        %420 = vrot.lane.b32.xlu0 %v349, 126
        %v421 = vpop.permute.xlu0 %420
        %vm422 = vcmask 1031168
        %v423 = vsel %vm422, %v417, %v419
        %v424 = vsel %vm422, %v419, %v421
        %v427 = vadd.f32 %v411, %v423
        %v428 = vadd.f32 %v412, %v424
        %432 = vrot.lane.b32.xlu0 %v371, 112
        %v433 = vpop.permute.xlu0 %432
        %434 = vrot.lane.b32.xlu0 %v372, 112
        %v435 = vpop.permute.xlu0 %434
        %436 = vrot.lane.b32.xlu0 %v373, 112
        %v437 = vpop.permute.xlu0 %436
        %vm438 = vcmask 916480
        %v439 = vsel %vm438, %v433, %v435
        %v440 = vsel %vm438, %v435, %v437
        %v443 = vadd.f32 %v427, %v439
        %v444 = vadd.f32 %v428, %v440
        %vm445 = vcmask 1041408
        %v446 = vsel %vm445, %v443, 0.0
        %v447 = vrot.slane %v446, 4
        %v448 = vadd.f32 %v446, %v447
        %v449 = vrot.slane %v448, 2
        %v450 = vadd.f32 %v448, %v449
        %v451 = vrot.slane %v450, 1
        %v452 = vadd.f32 %v450, %v451
        %v453 = vsel %vm445, %v444, 0.0
        %v454 = vrot.slane %v453, 4
        %v455 = vadd.f32 %v453, %v454
        %v456 = vrot.slane %v455, 2
        %v457 = vadd.f32 %v455, %v456
        %v458 = vrot.slane %v457, 1
        %v459 = vadd.f32 %v457, %v458
        %v460 = vxor.u32 %v452, 2147483648
        %v461 = vxor.u32 %v459, 2147483648
        %v462 = vmul.f32 %v460, 1.442695
        %v463 = vpow.pop %v462
        %v464 = vmul.f32 %v461, 1.442695
        %v465 = vpow.pop %v464
        %v466 = vadd.f32 %v463, 1.0
        %v467 = vadd.f32 %v465, 1.0
        %v468 = vrcp.pop %v466
        %v469 = vmul.f32 %v466, %v468
        %v470 = vsub.f32 1.0, %v469
        %v471 = vmul.f32 %v468, %v470
        %v472 = vadd.f32 %v468, %v471
        %vm473 = vweird.f32 %v466
        %vm474 = vweird.f32 %v468
        %vm475 = vmor %vm473, %vm474
        %v476 = vsel %vm475, %v468, %v472
        %v477 = vand.u32 2147483647, %v466
        %vm478 = vcmp.eq.f32.partialorder %v477, 8.507059e+37
        %v479 = vand.u32 %v466, 2147483648
        %v480 = vor.u32 1.1754944e-38, %v479
        %v481 = vsel %vm478, %v480, %v476
        %v482 = vmul.f32 1.0, %v481
        %v483 = vrcp.pop %v467
        %v484 = vmul.f32 %v467, %v483
        %v485 = vsub.f32 1.0, %v484
        %v486 = vmul.f32 %v483, %v485
        %v487 = vadd.f32 %v483, %v486
        %vm488 = vweird.f32 %v467
        %vm489 = vweird.f32 %v483
        %vm490 = vmor %vm488, %vm489
        %v491 = vsel %vm490, %v483, %v487
        %v492 = vand.u32 2147483647, %v467
        %vm493 = vcmp.eq.f32.partialorder %v492, 8.507059e+37
        %v494 = vand.u32 %v467, 2147483648
        %v495 = vor.u32 1.1754944e-38, %v494
        %v496 = vsel %vm493, %v495, %v491
        %v497 = vmul.f32 1.0, %v496
        %v500 = vrot.slane %v497, 7
        %v501 = vsel %vm246, %v482, %v500
        %v503 = vlaneseq
        %vm504 = vcmp.ge.s32.totalorder %v503, 0
        %vm505 = vcmp.lt.s32.totalorder %v503, 256
        %vm506 = vmand %vm504, %vm505
        %507 = vst.msk [vmem:[%s176] sm:$0x3] %vm506, %v501
        %s508 = sand.u32 %s75, 1
        %s509 = scalar_lea.sflag [#allocation4], %s508
        %s510 = sand.u32 %s75, 1
        %s511 = smul.addr %s510, 2
        %s512 = scalar_lea.vmem [#allocation7], %s511
        // Predicated region
        $region37: #{tpu_custom_call.1} parent=27 // pred_check
          %p513 = pneg %p85
        $region38: #{tpu_custom_call.1} parent=27 // pred_check_branch
          %515 = sbr.rel (%p513) target = $region40
        $region39: #{tpu_custom_call.1} parent=27 // pred_region
          %517 = vsyncadd %s509, 0
          %s518 = smul.addr %s20, 2
          %s519 = scalar_lea.hbm %s2, %s518
          %s521 = sshll.u32 %s512, 4
          %s522 = int_to_ptr.vmem [resolvable:$true] %s521
          %s523 = sshll.u32 %s519, 4
          %s524 = int_to_ptr.hbm [resolvable:$true] %s523
          %526 = dma.vmem_to_hbm [thread:$0]  %s522, 32, %s524, %s509
        $region40: #{tpu_custom_call.1} parent=27 // pred_fallthru
          _
      $region28: #{tpu_custom_call.1} parent=5 // pred_fallthru
        _
      %p527 = scmp.le.s32.totalorder 2, %s15
      // Predicated region
      $region41: #{tpu_custom_call.1} parent=5 // pred_check
        %p528 = pneg %p527
      $region42: #{tpu_custom_call.1} parent=5 // pred_check_branch
        %530 = sbr.rel (%p528) target = $region44
      $region43: #{tpu_custom_call.1} parent=5 // pred_region
        %s531 = ssub.s32 %s15, 2
        // Predicated region
        $region45: #{tpu_custom_call.1} parent=43 // pred_check
          %p532 = pneg %p91
        $region46: #{tpu_custom_call.1} parent=43 // pred_check_branch
          %534 = sbr.rel (%p532) target = $region48
        $region47: #{tpu_custom_call.1} parent=43 // pred_region
          %s535 = sand.u32 %s76, 1
          %s536 = scalar_lea.sflag [#allocation4], %s535
          %s537 = sand.u32 %s76, 1
          %s538 = smul.addr %s537, 2
          %s539 = scalar_lea.vmem [#allocation7], %s538
          %541 = dma.done %s536, 32
        $region48: #{tpu_custom_call.1} parent=43 // pred_fallthru
          _
      $region44: #{tpu_custom_call.1} parent=5 // pred_fallthru
        _
    $region6: #{tpu_custom_call.1} parent=1 // loop_footer
      %s19 = sadd.s32 1, %s15
    $region7: #{tpu_custom_call.1} parent=1 // loop_footer_branch
      %14 = sbr.rel target = $region3
    $region8: #{tpu_custom_call.1} parent=1 // loop_exit
      _
    %542 = vsyncpa [#allocation3], 1
    %s543 = scalar_lea.sflag [#allocation3], 1
    %544 = vsyncpa %s543, 1
    %545 = vsyncpa [#allocation6], 1
    %546 = vsyncpa [#allocation4], 1
    %s547 = scalar_lea.sflag [#allocation4], 1
    %548 = vsyncpa %s547, 1

</llo_original>
